<compile_context>
chip_gen: v7x
topology: tpu7x:2x2x1
jax: 0.10.0
libtpu: 0.0.40
codegen_flags: <defaults>
</compile_context>

<pallas_src>
import functools

import jax
import jax.numpy as jnp
from jax import lax
from jax.experimental import pallas as pl
from jax.experimental.pallas import tpu as pltpu

_TM = 128  # positions per grid step (lane dimension of every tile)


def _convlstm_kernel(w_ref, b_ref, p_ref, c_ref, h_out_ref, c_out_ref, *,
                     hidden):
    """One 128-position tile per grid step (channel-major layout).

    w_ref    : (4*hidden, Kp)   bf16  flattened conv weight (same every step)
    b_ref    : (4*hidden, TM)   f32   bias, pre-broadcast over the tile
    p_ref    : (Kp, TM)         bf16  im2col patches for this tile
    c_ref    : (hidden, TM)     f32   previous cell state
    h_out_ref: (hidden, TM)     f32
    c_out_ref: (hidden, TM)     f32
    """
    # Single fused MXU matmul (bf16 x bf16 -> f32 accumulate).
    acc = jnp.dot(w_ref[...], p_ref[...], preferred_element_type=jnp.float32)
    acc = acc + b_ref[...]

    # Gate split = static sublane slices; all elementwise math in f32.
    i = jax.nn.sigmoid(acc[0 * hidden:1 * hidden, :])
    f = jax.nn.sigmoid(acc[1 * hidden:2 * hidden, :])
    o = jax.nn.sigmoid(acc[2 * hidden:3 * hidden, :])
    g = jnp.tanh(acc[3 * hidden:4 * hidden, :])

    c_prev = c_ref[...]
    c_next = f * c_prev + i * g
    h_next = o * jnp.tanh(c_next)

    h_out_ref[...] = h_next.astype(h_out_ref.dtype)
    c_out_ref[...] = c_next.astype(c_out_ref.dtype)


def conv_lstm_cell(x, h_cur, c_cur, weight, bias, kernel_size):
    """ConvLSTMCell.forward.

    x      : (N, c_in, H, W)       float32 (NCHW, matching PyTorch)
    h_cur  : (N, hidden, H, W)
    c_cur  : (N, hidden, H, W)
    weight : (4*hidden, c_in+hidden, kh, kw)   PyTorch OIHW conv weight
    bias   : (4*hidden,)
    returns (h_next, c_next), both (N, hidden, H, W) float32
    """
    kh, kw = kernel_size
    # PyTorch padding = kernel_size // 2 only preserves spatial shape (and
    # hence the recurrent state shape) for odd kernels.
    assert kh % 2 == 1 and kw % 2 == 1, "ConvLSTMCell requires odd kernel sizes"

    N, c_in, H, W = x.shape
    hidden = h_cur.shape[1]
    c_total = c_in + hidden
    ph, pw = kh // 2, kw // 2

    M = N * H * W                       # flattened spatial positions
    K = kh * kw * c_total               # im2col contraction size
    Kp = ((K + 127) // 128) * 128       # pad K -> (8,128) aligned tiles
    Mp = ((M + _TM - 1) // _TM) * _TM   # pad positions to the tile size
    G = 4 * hidden

    # ---------------- wrapper-side layout glue (plain XLA) ----------------
    x_nhwc = jnp.transpose(x, (0, 2, 3, 1))
    h_nhwc = jnp.transpose(h_cur, (0, 2, 3, 1))
    comb = jnp.concatenate([x_nhwc, h_nhwc], axis=-1)               # (N,H,W,Ct)
    comb_p = jnp.pad(comb, ((0, 0), (ph, ph), (pw, pw), (0, 0)))

    # im2col, K ordered (ki, kj, c) to match the flattened weight below.
    taps = [comb_p[:, ki:ki + H, kj:kj + W, :]
            for ki in range(kh) for kj in range(kw)]
    patches = jnp.concatenate(taps, axis=-1).reshape(M, K)          # (M, K)
    patches_t = jnp.pad(patches.T, ((0, Kp - K), (0, Mp - M)))      # (Kp, Mp)
    patches_t = patches_t.astype(jnp.bfloat16)

    # OIHW -> (4*hidden, K) with K ordered (ki, kj, c); zero-pad K.
    w_t = jnp.transpose(weight, (0, 2, 3, 1)).reshape(G, K)
    w_t = jnp.pad(w_t, ((0, 0), (0, Kp - K))).astype(jnp.bfloat16)  # (G, Kp)

    # Bias pre-broadcast over one tile (f32, exact shape match in-kernel).
    b_tile = jnp.broadcast_to(bias.astype(jnp.float32)[:, None], (G, _TM))

    # Previous cell state, channel-major (hidden, positions), lane-dense.
    c_t = jnp.transpose(c_cur, (1, 0, 2, 3)).reshape(hidden, M)
    c_t = jnp.pad(c_t.astype(jnp.float32), ((0, 0), (0, Mp - M)))   # (hid, Mp)

    kernel = functools.partial(_convlstm_kernel, hidden=hidden)

    h_t, c_nt = pl.pallas_call(
        kernel,
        out_shape=(jax.ShapeDtypeStruct((hidden, Mp), jnp.float32),
                   jax.ShapeDtypeStruct((hidden, Mp), jnp.float32)),
        grid_spec=pltpu.PrefetchScalarGridSpec(
            num_scalar_prefetch=0,
            grid=(Mp // _TM,),
            in_specs=[
                pl.BlockSpec((G, Kp), lambda i: (0, 0)),       # weight (shared)
                pl.BlockSpec((G, _TM), lambda i: (0, 0)),      # bias tile
                pl.BlockSpec((Kp, _TM), lambda i: (0, i)),     # im2col patches
                pl.BlockSpec((hidden, _TM), lambda i: (0, i)), # c_prev
            ],
            out_specs=[
                pl.BlockSpec((hidden, _TM), lambda i: (0, i)),
                pl.BlockSpec((hidden, _TM), lambda i: (0, i)),
            ],
        ),
        compiler_params=pltpu.CompilerParams(
            dimension_semantics=("parallel",)),
    )(w_t, b_tile, patches_t, c_t)

    # (hidden, Mp) -> NCHW
    h_next = jnp.transpose(h_t[:, :M].reshape(hidden, N, H, W), (1, 0, 2, 3))
    c_next = jnp.transpose(c_nt[:, :M].reshape(hidden, N, H, W), (1, 0, 2, 3))
    return h_next, c_next


def _reference(x, h_cur, c_cur, weight, bias):
    """Pure-JAX f32 reference matching the PyTorch forward (NCHW)."""
    combined = jnp.concatenate([x, h_cur], axis=1)
    conv = lax.conv_general_dilated(
        combined, weight, window_strides=(1, 1), padding="SAME",
        dimension_numbers=("NCHW", "OIHW", "NCHW"))
    conv = conv + bias.reshape(1, -1, 1, 1)
    hidden = h_cur.shape[1]
    cc_i, cc_f, cc_o, cc_g = jnp.split(conv, 4, axis=1)
    i = jax.nn.sigmoid(cc_i)
    f = jax.nn.sigmoid(cc_f)
    o = jax.nn.sigmoid(cc_o)
    g = jnp.tanh(cc_g)
    c_next = f * c_cur + i * g
    h_next = o * jnp.tanh(c_next)
    return h_next, c_next


if __name__ == "__main__":
    # Small shapes consistent with the module's forward.
    N, c_in, hidden = 2, 4, 32
    H = W = 16
    kernel_size = (3, 3)
    c_total = c_in + hidden

    key = jax.random.PRNGKey(0)
    kx, kh_, kc, kw_, kb = jax.random.split(key, 5)

    x = jax.random.normal(kx, (N, c_in, H, W), jnp.float32)
    h_cur = jax.random.normal(kh_, (N, hidden, H, W), jnp.float32)
    c_cur = jax.random.normal(kc, (N, hidden, H, W), jnp.float32)

    # Deterministic synthetic parameters (same shapes as nn.Conv2d in __init__).
    weight = 0.1 * jax.random.normal(
        kw_, (4 * hidden, c_total, kernel_size[0], kernel_size[1]), jnp.float32)
    bias = 0.1 * jax.random.normal(kb, (4 * hidden,), jnp.float32)

    h_next, c_next = conv_lstm_cell(x, h_cur, c_cur, weight, bias, kernel_size)
    jax.block_until_ready((h_next, c_next))

    h_ref, c_ref = _reference(x, h_cur, c_cur, weight, bias)
    # Tolerance reflects the *intentional* bf16 matmul inputs (per perf
    # review); gate/state math stays in f32.
    assert jnp.allclose(h_next, h_ref, atol=5e-2, rtol=5e-2), "h mismatch"
    assert jnp.allclose(c_next, c_ref, atol=5e-2, rtol=5e-2), "c mismatch"

    print("KERNEL_OK")
</pallas_src>

<mosaic_0001>
module attributes {stable_mosaic.version = 11 : i64} {
  func.func @_convlstm_kernel(%arg0: i32, %arg1: memref<128x384xbf16, #tpu.memory_space<vmem>>, %arg2: memref<128x128xf32, #tpu.memory_space<vmem>>, %arg3: memref<384x128xbf16, #tpu.memory_space<vmem>>, %arg4: memref<32x128xf32, #tpu.memory_space<vmem>>, %arg5: memref<32x128xf32, #tpu.memory_space<vmem>>, %arg6: memref<32x128xf32, #tpu.memory_space<vmem>>) attributes {dimension_semantics = [#tpu.dimension_semantics<parallel>], iteration_bounds = array<i64: 4>, scalar_prefetch = 0 : i64, scratch_operands = 0 : i64, tpu.core_type = #tpu.core_type<tc>, window_params = [{pipeline_mode = #tpu.pipeline_mode<synchronous>, transform_indices = @transform_0, window_bounds = array<i64: 128, 384>}, {pipeline_mode = #tpu.pipeline_mode<synchronous>, transform_indices = @transform_1, window_bounds = array<i64: 128, 128>}, {transform_indices = @transform_2, window_bounds = array<i64: 384, 128>}, {transform_indices = @transform_3, window_bounds = array<i64: 32, 128>}, {transform_indices = @transform_4, window_bounds = array<i64: 32, 128>}, {transform_indices = @transform_5, window_bounds = array<i64: 32, 128>}]} {
    %c0 = arith.constant 0 : index
    %c0_0 = arith.constant 0 : index
    %0 = vector.load %arg1[%c0, %c0_0] : memref<128x384xbf16, #tpu.memory_space<vmem>>, vector<128x384xbf16>
    %c0_1 = arith.constant 0 : index
    %c0_2 = arith.constant 0 : index
    %1 = vector.load %arg3[%c0_1, %c0_2] : memref<384x128xbf16, #tpu.memory_space<vmem>>, vector<384x128xbf16>
    %cst = arith.constant dense<0.000000e+00> : vector<128x128xf32>
    %2 = tpu.matmul %0, %1, %cst {dimension_numbers = #tpu.dot_dimension_numbers<[1], [0], [0], [1], [0, 0, 1, 1], [], []>} : vector<128x384xbf16>, vector<384x128xbf16>, vector<128x128xf32> -> vector<128x128xf32>
    %c0_3 = arith.constant 0 : index
    %c0_4 = arith.constant 0 : index
    %3 = vector.load %arg2[%c0_3, %c0_4] : memref<128x128xf32, #tpu.memory_space<vmem>>, vector<128x128xf32>
    %4 = arith.addf %2, %3 : vector<128x128xf32>
    %5 = vector.extract_strided_slice %4 {offsets = [0, 0], sizes = [32, 128], strides = [1, 1]} : vector<128x128xf32> to vector<32x128xf32>
    %6 = arith.negf %5 : vector<32x128xf32>
    %7 = math.exp %6 : vector<32x128xf32>
    %cst_5 = arith.constant 1.000000e+00 : f32
    %8 = vector.broadcast %cst_5 : f32 to vector<32x128xf32>
    %9 = arith.addf %8, %7 : vector<32x128xf32>
    %10 = arith.divf %8, %9 : vector<32x128xf32>
    %11 = vector.extract_strided_slice %4 {offsets = [32, 0], sizes = [32, 128], strides = [1, 1]} : vector<128x128xf32> to vector<32x128xf32>
    %12 = arith.negf %11 : vector<32x128xf32>
    %13 = math.exp %12 : vector<32x128xf32>
    %cst_6 = arith.constant 1.000000e+00 : f32
    %14 = vector.broadcast %cst_6 : f32 to vector<32x128xf32>
    %15 = arith.addf %14, %13 : vector<32x128xf32>
    %16 = arith.divf %14, %15 : vector<32x128xf32>
    %17 = vector.extract_strided_slice %4 {offsets = [64, 0], sizes = [32, 128], strides = [1, 1]} : vector<128x128xf32> to vector<32x128xf32>
    %18 = arith.negf %17 : vector<32x128xf32>
    %19 = math.exp %18 : vector<32x128xf32>
    %cst_7 = arith.constant 1.000000e+00 : f32
    %20 = vector.broadcast %cst_7 : f32 to vector<32x128xf32>
    %21 = arith.addf %20, %19 : vector<32x128xf32>
    %22 = arith.divf %20, %21 : vector<32x128xf32>
    %23 = vector.extract_strided_slice %4 {offsets = [96, 0], sizes = [32, 128], strides = [1, 1]} : vector<128x128xf32> to vector<32x128xf32>
    %24 = math.tanh %23 : vector<32x128xf32>
    %c0_8 = arith.constant 0 : index
    %c0_9 = arith.constant 0 : index
    %25 = vector.load %arg4[%c0_8, %c0_9] : memref<32x128xf32, #tpu.memory_space<vmem>>, vector<32x128xf32>
    %26 = arith.mulf %16, %25 : vector<32x128xf32>
    %27 = arith.mulf %10, %24 : vector<32x128xf32>
    %28 = arith.addf %26, %27 : vector<32x128xf32>
    %29 = math.tanh %28 : vector<32x128xf32>
    %30 = arith.mulf %22, %29 : vector<32x128xf32>
    %c0_10 = arith.constant 0 : index
    %c0_11 = arith.constant 0 : index
    %31 = vector.load %arg5[%c0_10, %c0_11] : memref<32x128xf32, #tpu.memory_space<vmem>>, vector<32x128xf32>
    tpu.vector_store %arg5[%c0_10, %c0_11], %30 {strides = array<i32>} : memref<32x128xf32, #tpu.memory_space<vmem>>, vector<32x128xf32>,
    %c0_12 = arith.constant 0 : index
    %c0_13 = arith.constant 0 : index
    %32 = vector.load %arg6[%c0_12, %c0_13] : memref<32x128xf32, #tpu.memory_space<vmem>>, vector<32x128xf32>
    tpu.vector_store %arg6[%c0_12, %c0_13], %28 {strides = array<i32>} : memref<32x128xf32, #tpu.memory_space<vmem>>, vector<32x128xf32>,
    return
  }
  func.func @transform_0(%arg0: i32) -> (i32, i32) {
    %c0_i32 = arith.constant 0 : i32
    %c0_i32_0 = arith.constant 0 : i32
    %c0_i32_1 = arith.constant 0 : i32
    return %c0_i32, %c0_i32_0 : i32, i32
  }
  func.func @transform_1(%arg0: i32) -> (i32, i32) {
    %c0_i32 = arith.constant 0 : i32
    %c0_i32_0 = arith.constant 0 : i32
    %c0_i32_1 = arith.constant 0 : i32
    return %c0_i32, %c0_i32_0 : i32, i32
  }
  func.func @transform_2(%arg0: i32) -> (i32, i32) {
    %c0_i32 = arith.constant 0 : i32
    %c0_i32_0 = arith.constant 0 : i32
    return %c0_i32, %arg0 : i32, i32
  }
  func.func @transform_3(%arg0: i32) -> (i32, i32) {
    %c0_i32 = arith.constant 0 : i32
    %c0_i32_0 = arith.constant 0 : i32
    return %c0_i32, %arg0 : i32, i32
  }
  func.func @transform_4(%arg0: i32) -> (i32, i32) {
    %c0_i32 = arith.constant 0 : i32
    %c0_i32_0 = arith.constant 0 : i32
    return %c0_i32, %arg0 : i32, i32
  }
  func.func @transform_5(%arg0: i32) -> (i32, i32) {
    %c0_i32 = arith.constant 0 : i32
    %c0_i32_0 = arith.constant 0 : i32
    return %c0_i32, %arg0 : i32, i32
  }
}

</mosaic_0001>

<llo_original>
// kernel: tpu_custom_call.1
$region0: #{tpu_custom_call.1}
  #allocation0 [shape = 'u32[]', space=smem, size = 0x4, offset = 0x4, fixed_abs, tag = 'smem constant byte address 0x4 - core index']
  #allocation1 [shape = 'u32[144,128]{1,0:T(1,128)}', space=vmem, size = 0x12000, scoped, tag = 'internal scratch']
  %s0 = inlined_call_operand.hbm [shape: bf16[128,384], index: 0, kind: input, shape index: {}]
  %s1 = inlined_call_operand.hbm [shape: f32[128,128], index: 1, kind: input, shape index: {}]
  %s2 = inlined_call_operand.hbm [shape: bf16[384,512], index: 2, kind: input, shape index: {}]
  %s3 = inlined_call_operand.hbm [shape: f32[32,512], index: 3, kind: input, shape index: {}]
  %s4 = inlined_call_operand.hbm [shape: f32[32,512], index: 4, kind: output, shape index: {0}]
  %s5 = inlined_call_operand.hbm [shape: f32[32,512], index: 5, kind: output, shape index: {1}]
  %6 = xla_tuple %s4, %s5
  %s7 = sld [smem:[#allocation0]]
  $region73: #{tpu_custom_call.1} parent=0
    _
  %s9 = ssub.s32 1, %s7
  %s10 = scalar_select 0, %s9, %s7
  $region1: #{tpu_custom_call.1} parent=0
    #allocation2 [shape = 'u8[98304]{0}', space=vmem, size = 0x18000, scoped, tag = 'input window, operand 0, single buffered']
    #allocation3 [shape = 's32[2]{0}', space=sflag, size = 0x8, scoped, tag = 'scoped memory for tpu_custom_call.1']
    #allocation4 [shape = 's32[2]{0}', space=sflag, size = 0x8, scoped, tag = 'scoped memory for tpu_custom_call.1']
    #allocation5 [shape = 'u8[65536]{0}', space=vmem, size = 0x10000, scoped, tag = 'input window, operand 1, single buffered']
    #allocation6 [shape = 's32[1]{0}', space=sflag, size = 0x4, scoped, tag = 'scoped memory for tpu_custom_call.1']
    #allocation7 [shape = 'u8[196608]{0}', space=vmem, size = 0x30000, scoped, tag = 'input window, operand 2']
    #allocation8 [shape = 'u8[32768]{0}', space=vmem, size = 0x8000, scoped, tag = 'input window, operand 3']
    #allocation9 [shape = 'u8[32768]{0}', space=vmem, size = 0x8000, scoped, tag = 'output window, operand 0']
    #allocation10 [shape = 'u8[32768]{0}', space=vmem, size = 0x8000, scoped, tag = 'output window, operand 1']
    #allocation11 [shape = 's32[2]{0}', space=sflag, size = 0x8, scoped, tag = 'scoped memory for tpu_custom_call.1']
    %11 = vsyncpa [#allocation3], 0
    %12 = vsyncpa [#allocation6], 0
    %13 = vsyncpa [#allocation4], 0
    %s14 = scalar_lea.sflag [#allocation4], 1
    %15 = vsyncpa %s14, 0
    %16 = vsyncpa [#allocation11], 0
    %s17 = scalar_lea.sflag [#allocation11], 1
    %18 = vsyncpa %s17, 0
    loop: start=0, step=1, limit=6
    $region2: #{tpu_custom_call.1} parent=1 // loop_pre_header
      _
    $region3: #{tpu_custom_call.1} parent=1 // loop_header
      %s20 = sphi 0, %s24
      %p21 = scmp.ge.s32.totalorder %s20, 6
      %s28 = sphi 0, %s28
      %s30 = sphi 0, %s28
      %s31 = sphi 0, %s30
      %s45 = sphi 0, %s31
      %s49 = sphi 0, %s49
      %s51 = sphi 0, %s49
      %s52 = sphi 0, %s51
      %s66 = sphi 0, %s52
      %s72 = sphi 0, %s74
      %s75 = sphi 0, %s72
      %s76 = sphi 0, %s75
      %s92 = sphi 0, %s76
      %s98 = sphi 0, %s100
      %s101 = sphi 0, %s98
      %s102 = sphi 0, %s101
      %s118 = sphi 0, %s102
      %s124 = sphi 0, %s126
      %s127 = sphi 0, %s124
      %s128 = sphi 0, %s127
      %s144 = sphi 0, %s128
      %s150 = sphi 0, %s152
      %s153 = sphi 0, %s150
      %s154 = sphi 0, %s153
      %s170 = sphi 0, %s154
    $region4: #{tpu_custom_call.1} parent=1 // loop_header_branch
      %23 = sbr.rel (%p21) target = $region8
    $region5: #{tpu_custom_call.1} parent=1 // loop_body
      %s25 = ssub.s32 %s20, 1
      %s26 = ssub.s32 %s20, 2
      %s27 = sadd.s32 %s20, 1
      %s29 = sadd.s32 %s28, 1
      %p32 = scmp.eq.s32.totalorder %s20, 3
      %p33 = scmp.ne.s32.totalorder %s28, %s30
      %p34 = scmp.eq.s32.totalorder %s20, 0
      %p35 = por %p33, %p34
      %p36 = scmp.ne.s32.totalorder %s28, %s30
      %p37 = scmp.eq.s32.totalorder %s25, 3
      %p38 = por %p36, %p37
      %p39 = scmp.ne.s32.totalorder %s30, %s31
      %p40 = scmp.eq.s32.totalorder %s25, 0
      %p41 = por %p39, %p40
      %p42 = scmp.ne.s32.totalorder %s30, %s31
      %p43 = scmp.eq.s32.totalorder %s26, 3
      %p44 = por %p42, %p43
      %p46 = scmp.ne.s32.totalorder %s31, %s45
      %p47 = scmp.eq.s32.totalorder %s26, 0
      %p48 = por %p46, %p47
      %s50 = sadd.s32 %s49, 1
      %p53 = scmp.eq.s32.totalorder %s20, 3
      %p54 = scmp.ne.s32.totalorder %s49, %s51
      %p55 = scmp.eq.s32.totalorder %s20, 0
      %p56 = por %p54, %p55
      %p57 = scmp.ne.s32.totalorder %s49, %s51
      %p58 = scmp.eq.s32.totalorder %s25, 3
      %p59 = por %p57, %p58
      %p60 = scmp.ne.s32.totalorder %s51, %s52
      %p61 = scmp.eq.s32.totalorder %s25, 0
      %p62 = por %p60, %p61
      %p63 = scmp.ne.s32.totalorder %s51, %s52
      %p64 = scmp.eq.s32.totalorder %s26, 3
      %p65 = por %p63, %p64
      %p67 = scmp.ne.s32.totalorder %s52, %s66
      %p68 = scmp.eq.s32.totalorder %s26, 0
      %p69 = por %p67, %p68
      %s70 = ssub.s32 %s20, %s27
      %p71 = scmp.eq.s32.totalorder %s70, 0
      %s73 = sadd.s32 %s72, 1
      %s74 = scalar_select %p71, %s72, %s73
      %p77 = pneg %p71
      %p78 = scmp.eq.s32.totalorder %s20, 3
      %p79 = por %p77, %p78
      %p80 = scmp.ne.s32.totalorder %s72, %s75
      %p81 = scmp.eq.s32.totalorder %s20, 0
      %p82 = por %p80, %p81
      %p83 = scmp.ne.s32.totalorder %s72, %s75
      %p84 = scmp.eq.s32.totalorder %s25, 3
      %p85 = por %p83, %p84
      %p86 = scmp.ne.s32.totalorder %s75, %s76
      %p87 = scmp.eq.s32.totalorder %s25, 0
      %p88 = por %p86, %p87
      %p89 = scmp.ne.s32.totalorder %s75, %s76
      %p90 = scmp.eq.s32.totalorder %s26, 3
      %p91 = por %p89, %p90
      %p93 = scmp.ne.s32.totalorder %s76, %s92
      %p94 = scmp.eq.s32.totalorder %s26, 0
      %p95 = por %p93, %p94
      %s96 = ssub.s32 %s20, %s27
      %p97 = scmp.eq.s32.totalorder %s96, 0
      %s99 = sadd.s32 %s98, 1
      %s100 = scalar_select %p97, %s98, %s99
      %p103 = pneg %p97
      %p104 = scmp.eq.s32.totalorder %s20, 3
      %p105 = por %p103, %p104
      %p106 = scmp.ne.s32.totalorder %s98, %s101
      %p107 = scmp.eq.s32.totalorder %s20, 0
      %p108 = por %p106, %p107
      %p109 = scmp.ne.s32.totalorder %s98, %s101
      %p110 = scmp.eq.s32.totalorder %s25, 3
      %p111 = por %p109, %p110
      %p112 = scmp.ne.s32.totalorder %s101, %s102
      %p113 = scmp.eq.s32.totalorder %s25, 0
      %p114 = por %p112, %p113
      %p115 = scmp.ne.s32.totalorder %s101, %s102
      %p116 = scmp.eq.s32.totalorder %s26, 3
      %p117 = por %p115, %p116
      %p119 = scmp.ne.s32.totalorder %s102, %s118
      %p120 = scmp.eq.s32.totalorder %s26, 0
      %p121 = por %p119, %p120
      %s122 = ssub.s32 %s20, %s27
      %p123 = scmp.eq.s32.totalorder %s122, 0
      %s125 = sadd.s32 %s124, 1
      %s126 = scalar_select %p123, %s124, %s125
      %p129 = pneg %p123
      %p130 = scmp.eq.s32.totalorder %s20, 3
      %p131 = por %p129, %p130
      %p132 = scmp.ne.s32.totalorder %s124, %s127
      %p133 = scmp.eq.s32.totalorder %s20, 0
      %p134 = por %p132, %p133
      %p135 = scmp.ne.s32.totalorder %s124, %s127
      %p136 = scmp.eq.s32.totalorder %s25, 3
      %p137 = por %p135, %p136
      %p138 = scmp.ne.s32.totalorder %s127, %s128
      %p139 = scmp.eq.s32.totalorder %s25, 0
      %p140 = por %p138, %p139
      %p141 = scmp.ne.s32.totalorder %s127, %s128
      %p142 = scmp.eq.s32.totalorder %s26, 3
      %p143 = por %p141, %p142
      %p145 = scmp.ne.s32.totalorder %s128, %s144
      %p146 = scmp.eq.s32.totalorder %s26, 0
      %p147 = por %p145, %p146
      %s148 = ssub.s32 %s20, %s27
      %p149 = scmp.eq.s32.totalorder %s148, 0
      %s151 = sadd.s32 %s150, 1
      %s152 = scalar_select %p149, %s150, %s151
      %p155 = pneg %p149
      %p156 = scmp.eq.s32.totalorder %s20, 3
      %p157 = por %p155, %p156
      %p158 = scmp.ne.s32.totalorder %s150, %s153
      %p159 = scmp.eq.s32.totalorder %s20, 0
      %p160 = por %p158, %p159
      %p161 = scmp.ne.s32.totalorder %s150, %s153
      %p162 = scmp.eq.s32.totalorder %s25, 3
      %p163 = por %p161, %p162
      %p164 = scmp.ne.s32.totalorder %s153, %s154
      %p165 = scmp.eq.s32.totalorder %s25, 0
      %p166 = por %p164, %p165
      %p167 = scmp.ne.s32.totalorder %s153, %s154
      %p168 = scmp.eq.s32.totalorder %s26, 3
      %p169 = por %p167, %p168
      %p171 = scmp.ne.s32.totalorder %s154, %s170
      %p172 = scmp.eq.s32.totalorder %s26, 0
      %p173 = por %p171, %p172
      %p174 = scmp.le.s32.totalorder 1, %s20
      %p175 = scmp.lt.s32.totalorder %s20, 5
      %p176 = pnand %p174, %p175
      %p177 = pneg %p176
      // Predicated region
      $region9: #{tpu_custom_call.1} parent=5 // pred_check
        _
      $region10: #{tpu_custom_call.1} parent=5 // pred_check_branch
        %179 = sbr.rel (%p176) target = $region12
      $region11: #{tpu_custom_call.1} parent=5 // pred_region
        %s180 = ssub.s32 %s20, 1
        // Predicated region
        $region13: #{tpu_custom_call.1} parent=11 // pred_check
          %p181 = pneg %p41
        $region14: #{tpu_custom_call.1} parent=11 // pred_check_branch
          %183 = sbr.rel (%p181) target = $region16
        $region15: #{tpu_custom_call.1} parent=11 // pred_region
          %s185 = ssub.s32 3072, 3072
          %186 = vsyncadd [#allocation3], %s185
          %s187 = sshll.u32 [#allocation2], 4
          %s188 = int_to_ptr.vmem [resolvable:$true] %s187
          %193 = dma.hbm_to_vmem [thread:$0]  %s0, 3072, %s188, [#allocation3], 192, 192, 12
        $region16: #{tpu_custom_call.1} parent=11 // pred_fallthru
          _
        // Predicated region
        $region17: #{tpu_custom_call.1} parent=11 // pred_check
          %p194 = pneg %p62
        $region18: #{tpu_custom_call.1} parent=11 // pred_check_branch
          %196 = sbr.rel (%p194) target = $region20
        $region19: #{tpu_custom_call.1} parent=11 // pred_region
          %s198 = ssub.s32 2048, 2048
          %199 = vsyncadd [#allocation6], %s198
          %s200 = sshll.u32 [#allocation5], 4
          %s201 = int_to_ptr.vmem [resolvable:$true] %s200
          %206 = dma.hbm_to_vmem [thread:$0]  %s1, 2048, %s201, [#allocation6], 128, 128, 8
        $region20: #{tpu_custom_call.1} parent=11 // pred_fallthru
          _
      $region12: #{tpu_custom_call.1} parent=5 // pred_fallthru
        _
      %p207 = scmp.lt.s32.totalorder %s20, 4
      // Predicated region
      $region21: #{tpu_custom_call.1} parent=5 // pred_check
        %p208 = pneg %p207
      $region22: #{tpu_custom_call.1} parent=5 // pred_check_branch
        %210 = sbr.rel (%p208) target = $region24
      $region23: #{tpu_custom_call.1} parent=5 // pred_region
        // Predicated region
        $region25: #{tpu_custom_call.1} parent=23 // pred_check
          %p211 = pneg %p82
        $region26: #{tpu_custom_call.1} parent=23 // pred_check_branch
          %213 = sbr.rel (%p211) target = $region28
        $region27: #{tpu_custom_call.1} parent=23 // pred_region
          %s214 = sand.u32 %s20, 1
          %s215 = scalar_lea.sflag [#allocation3], %s214
          %s216 = sand.u32 %s72, 1
          %s217 = smul.addr %s216, 192
          %s218 = scalar_lea.vmem [#allocation7], %s217
          %s220 = ssub.s32 3072, 3072
          %221 = vsyncadd %s215, %s220
          %s222 = smul.addr %s20, 64
          %s223 = scalar_lea.hbm %s2, %s222
          %s224 = sshll.u32 %s218, 4
          %s225 = int_to_ptr.vmem [resolvable:$true] %s224
          %230 = dma.hbm_to_vmem [thread:$0]  %s223, 3072, %s225, %s215, 256, 64, 4
        $region28: #{tpu_custom_call.1} parent=23 // pred_fallthru
          _
        // Predicated region
        $region29: #{tpu_custom_call.1} parent=23 // pred_check
          %p231 = pneg %p108
        $region30: #{tpu_custom_call.1} parent=23 // pred_check_branch
          %233 = sbr.rel (%p231) target = $region32
        $region31: #{tpu_custom_call.1} parent=23 // pred_region
          %s234 = sand.u32 %s20, 1
          %s235 = scalar_lea.sflag [#allocation3], %s234
          %s236 = sand.u32 %s98, 1
          %s237 = smul.addr %s236, 32
          %s238 = scalar_lea.vmem [#allocation8], %s237
          %s240 = ssub.s32 512, 512
          %241 = vsyncadd %s235, %s240
          %s242 = smul.addr %s20, 128
          %s243 = scalar_lea.hbm %s3, %s242
          %s244 = sshll.u32 %s238, 4
          %s245 = int_to_ptr.vmem [resolvable:$true] %s244
          %250 = dma.hbm_to_vmem [thread:$0]  %s243, 512, %s245, %s235, 512, 128, 8
        $region32: #{tpu_custom_call.1} parent=23 // pred_fallthru
          _
      $region24: #{tpu_custom_call.1} parent=5 // pred_fallthru
        _
      %p251 = scmp.le.s32.totalorder 1, %s20
      %p252 = scmp.lt.s32.totalorder %s20, 5
      %p253 = pnand %p251, %p252
      %p254 = pneg %p253
      // Predicated region
      $region33: #{tpu_custom_call.1} parent=5 // pred_check
        _
      $region34: #{tpu_custom_call.1} parent=5 // pred_check_branch
        %256 = sbr.rel (%p253) target = $region36
      $region35: #{tpu_custom_call.1} parent=5 // pred_region
        %s257 = ssub.s32 %s20, 1
        // Predicated region
        $region37: #{tpu_custom_call.1} parent=35 // pred_check
          %p258 = pneg %p41
        $region38: #{tpu_custom_call.1} parent=35 // pred_check_branch
          %260 = sbr.rel (%p258) target = $region40
        $region39: #{tpu_custom_call.1} parent=35 // pred_region
          %261 = dma.done [#allocation3], 3072
        $region40: #{tpu_custom_call.1} parent=35 // pred_fallthru
          _
        // Predicated region
        $region41: #{tpu_custom_call.1} parent=35 // pred_check
          %p262 = pneg %p62
        $region42: #{tpu_custom_call.1} parent=35 // pred_check_branch
          %264 = sbr.rel (%p262) target = $region44
        $region43: #{tpu_custom_call.1} parent=35 // pred_region
          %265 = dma.done [#allocation6], 2048
        $region44: #{tpu_custom_call.1} parent=35 // pred_fallthru
          _
        %s266 = sand.u32 %s25, 1
        %s267 = scalar_lea.sflag [#allocation3], %s266
        %s268 = sand.u32 %s75, 1
        %s269 = smul.addr %s268, 192
        %s270 = scalar_lea.vmem [#allocation7], %s269
        // Predicated region
        $region45: #{tpu_custom_call.1} parent=35 // pred_check
          %p271 = pneg %p88
        $region46: #{tpu_custom_call.1} parent=35 // pred_check_branch
          %273 = sbr.rel (%p271) target = $region48
        $region47: #{tpu_custom_call.1} parent=35 // pred_region
          %274 = dma.done %s267, 3072
        $region48: #{tpu_custom_call.1} parent=35 // pred_fallthru
          _
        %s275 = sand.u32 %s25, 1
        %s276 = scalar_lea.sflag [#allocation3], %s275
        %s277 = sand.u32 %s101, 1
        %s278 = smul.addr %s277, 32
        %s279 = scalar_lea.vmem [#allocation8], %s278
        // Predicated region
        $region49: #{tpu_custom_call.1} parent=35 // pred_check
          %p280 = pneg %p114
        $region50: #{tpu_custom_call.1} parent=35 // pred_check_branch
          %282 = sbr.rel (%p280) target = $region52
        $region51: #{tpu_custom_call.1} parent=35 // pred_region
          %283 = dma.done %s276, 512
        $region52: #{tpu_custom_call.1} parent=35 // pred_fallthru
          _
        %p284 = pneg %p41
        %p285 = pneg %p38
        %p286 = pneg %p62
        %p287 = pneg %p59
        %s288 = sand.u32 %s25, 1
        %s289 = scalar_lea.sflag [#allocation3], %s288
        %s290 = sand.u32 %s75, 1
        %s291 = smul.addr %s290, 192
        %s292 = scalar_lea.vmem [#allocation7], %s291
        %p293 = pneg %p88
        %p294 = pneg %p85
        %s295 = sand.u32 %s25, 1
        %s296 = scalar_lea.sflag [#allocation3], %s295
        %s297 = sand.u32 %s101, 1
        %s298 = smul.addr %s297, 32
        %s299 = scalar_lea.vmem [#allocation8], %s298
        %p300 = pneg %p114
        %p301 = pneg %p111
        %p302 = pneg %p140
        %p303 = pneg %p137
        %s304 = sand.u32 %s127, 1
        %s305 = scalar_lea.sflag [#allocation4], %s304
        %s306 = sand.u32 %s127, 1
        %s307 = smul.addr %s306, 32
        %s308 = scalar_lea.vmem [#allocation9], %s307
        %p309 = pneg %p166
        %p310 = pneg %p163
        %s311 = sand.u32 %s153, 1
        %s312 = scalar_lea.sflag [#allocation11], %s311
        %s313 = sand.u32 %s153, 1
        %s314 = smul.addr %s313, 32
        %s315 = scalar_lea.vmem [#allocation10], %s314
        %v317 = vld [vmem:[#allocation2] sm:$0xff]
        %v318 = vld [vmem:[#allocation2 + $0x8] sm:$0xf]
        %v319 = vld [vmem:[#allocation2 + $0xc] sm:$0xff]
        %v320 = vld [vmem:[#allocation2 + $0x14] sm:$0xf]
        %v321 = vld [vmem:[#allocation2 + $0x18] sm:$0xff]
        %v322 = vld [vmem:[#allocation2 + $0x20] sm:$0xf]
        %v323 = vld [vmem:[#allocation2 + $0x24] sm:$0xff]
        %v324 = vld [vmem:[#allocation2 + $0x2c] sm:$0xf]
        %v325 = vld [vmem:[#allocation2 + $0x30] sm:$0xff]
        %v326 = vld [vmem:[#allocation2 + $0x38] sm:$0xf]
        %v327 = vld [vmem:[#allocation2 + $0x3c] sm:$0xff]
        %v328 = vld [vmem:[#allocation2 + $0x44] sm:$0xf]
        %v329 = vld [vmem:[#allocation2 + $0x48] sm:$0xff]
        %v330 = vld [vmem:[#allocation2 + $0x50] sm:$0xf]
        %v331 = vld [vmem:[#allocation2 + $0x54] sm:$0xff]
        %v332 = vld [vmem:[#allocation2 + $0x5c] sm:$0xf]
        %v333 = vld [vmem:[#allocation2 + $0x60] sm:$0xff]
        %v334 = vld [vmem:[#allocation2 + $0x68] sm:$0xf]
        %v335 = vld [vmem:[#allocation2 + $0x6c] sm:$0xff]
        %v336 = vld [vmem:[#allocation2 + $0x74] sm:$0xf]
        %v337 = vld [vmem:[#allocation2 + $0x78] sm:$0xff]
        %v338 = vld [vmem:[#allocation2 + $0x80] sm:$0xf]
        %v339 = vld [vmem:[#allocation2 + $0x84] sm:$0xff]
        %v340 = vld [vmem:[#allocation2 + $0x8c] sm:$0xf]
        %v341 = vld [vmem:[#allocation2 + $0x90] sm:$0xff]
        %v342 = vld [vmem:[#allocation2 + $0x98] sm:$0xf]
        %v343 = vld [vmem:[#allocation2 + $0x9c] sm:$0xff]
        %v344 = vld [vmem:[#allocation2 + $0xa4] sm:$0xf]
        %v345 = vld [vmem:[#allocation2 + $0xa8] sm:$0xff]
        %v346 = vld [vmem:[#allocation2 + $0xb0] sm:$0xf]
        %v347 = vld [vmem:[#allocation2 + $0xb4] sm:$0xff]
        %v348 = vld [vmem:[#allocation2 + $0xbc] sm:$0xf]
        %v349 = vld [vmem:[%s270] sm:$0xf]
        %v350 = vld [vmem:[%s270 + $0x4] sm:$0xf]
        %v351 = vld [vmem:[%s270 + $0x8] sm:$0xf]
        %v352 = vld [vmem:[%s270 + $0xc] sm:$0xf]
        %v353 = vld [vmem:[%s270 + $0x10] sm:$0xf]
        %v354 = vld [vmem:[%s270 + $0x14] sm:$0xf]
        %v355 = vld [vmem:[%s270 + $0x18] sm:$0xf]
        %v356 = vld [vmem:[%s270 + $0x1c] sm:$0xf]
        %v357 = vld [vmem:[%s270 + $0x20] sm:$0xf]
        %v358 = vld [vmem:[%s270 + $0x24] sm:$0xf]
        %v359 = vld [vmem:[%s270 + $0x28] sm:$0xf]
        %v360 = vld [vmem:[%s270 + $0x2c] sm:$0xf]
        %v361 = vld [vmem:[%s270 + $0x30] sm:$0xf]
        %v362 = vld [vmem:[%s270 + $0x34] sm:$0xf]
        %v363 = vld [vmem:[%s270 + $0x38] sm:$0xf]
        %v364 = vld [vmem:[%s270 + $0x3c] sm:$0xf]
        %v365 = vld [vmem:[%s270 + $0x40] sm:$0xf]
        %v366 = vld [vmem:[%s270 + $0x44] sm:$0xf]
        %v367 = vld [vmem:[%s270 + $0x48] sm:$0xf]
        %v368 = vld [vmem:[%s270 + $0x4c] sm:$0xf]
        %v369 = vld [vmem:[%s270 + $0x50] sm:$0xf]
        %v370 = vld [vmem:[%s270 + $0x54] sm:$0xf]
        %v371 = vld [vmem:[%s270 + $0x58] sm:$0xf]
        %v372 = vld [vmem:[%s270 + $0x5c] sm:$0xf]
        %v373 = vld [vmem:[%s270 + $0x60] sm:$0xf]
        %v374 = vld [vmem:[%s270 + $0x64] sm:$0xf]
        %v375 = vld [vmem:[%s270 + $0x68] sm:$0xf]
        %v376 = vld [vmem:[%s270 + $0x6c] sm:$0xf]
        %v377 = vld [vmem:[%s270 + $0x70] sm:$0xf]
        %v378 = vld [vmem:[%s270 + $0x74] sm:$0xf]
        %v379 = vld [vmem:[%s270 + $0x78] sm:$0xf]
        %v380 = vld [vmem:[%s270 + $0x7c] sm:$0xf]
        %v381 = vld [vmem:[%s270 + $0x80] sm:$0xf]
        %v382 = vld [vmem:[%s270 + $0x84] sm:$0xf]
        %v383 = vld [vmem:[%s270 + $0x88] sm:$0xf]
        %v384 = vld [vmem:[%s270 + $0x8c] sm:$0xf]
        %v385 = vld [vmem:[%s270 + $0x90] sm:$0xf]
        %v386 = vld [vmem:[%s270 + $0x94] sm:$0xf]
        %v387 = vld [vmem:[%s270 + $0x98] sm:$0xf]
        %v388 = vld [vmem:[%s270 + $0x9c] sm:$0xf]
        %v389 = vld [vmem:[%s270 + $0xa0] sm:$0xf]
        %v390 = vld [vmem:[%s270 + $0xa4] sm:$0xf]
        %v391 = vld [vmem:[%s270 + $0xa8] sm:$0xf]
        %v392 = vld [vmem:[%s270 + $0xac] sm:$0xf]
        %v393 = vld [vmem:[%s270 + $0xb0] sm:$0xf]
        %v394 = vld [vmem:[%s270 + $0xb4] sm:$0xf]
        %v395 = vld [vmem:[%s270 + $0xb8] sm:$0xf]
        %v396 = vld [vmem:[%s270 + $0xbc] sm:$0xf]
        %v397 = vld [vmem:[#allocation5] sm:$0xff]
        %v398 = vld [vmem:[#allocation5 + $0x8] sm:$0xff]
        %v399 = vld [vmem:[#allocation5 + $0x10] sm:$0xff]
        %v400 = vld [vmem:[#allocation5 + $0x18] sm:$0xff]
        %v401 = vld [vmem:[#allocation5 + $0x20] sm:$0xff]
        %v402 = vld [vmem:[#allocation5 + $0x28] sm:$0xff]
        %v403 = vld [vmem:[#allocation5 + $0x30] sm:$0xff]
        %v404 = vld [vmem:[#allocation5 + $0x38] sm:$0xff]
        %v405 = vld [vmem:[#allocation5 + $0x40] sm:$0xff]
        %v406 = vld [vmem:[#allocation5 + $0x48] sm:$0xff]
        %v407 = vld [vmem:[#allocation5 + $0x50] sm:$0xff]
        %v408 = vld [vmem:[#allocation5 + $0x58] sm:$0xff]
        %v409 = vld [vmem:[#allocation5 + $0x60] sm:$0xff]
        %v410 = vld [vmem:[#allocation5 + $0x68] sm:$0xff]
        %v411 = vld [vmem:[#allocation5 + $0x70] sm:$0xff]
        %v412 = vld [vmem:[#allocation5 + $0x78] sm:$0xff]
        %v445 = vunpack.c.l.b16 %v317
        %v446 = vunpack.c.h.b16 %v317
        %v447 = vunpack.c.l.b16 %v318
        %v448 = vunpack.c.l.b16 %v319
        %v449 = vunpack.c.h.b16 %v319
        %v450 = vunpack.c.l.b16 %v320
        %v451 = vunpack.c.l.b16 %v321
        %v452 = vunpack.c.h.b16 %v321
        %v453 = vunpack.c.l.b16 %v322
        %v454 = vunpack.c.l.b16 %v323
        %v455 = vunpack.c.h.b16 %v323
        %v456 = vunpack.c.l.b16 %v324
        %v457 = vunpack.c.l.b16 %v325
        %v458 = vunpack.c.h.b16 %v325
        %v459 = vunpack.c.l.b16 %v326
        %v460 = vunpack.c.l.b16 %v327
        %v461 = vunpack.c.h.b16 %v327
        %v462 = vunpack.c.l.b16 %v328
        %v463 = vunpack.c.l.b16 %v329
        %v464 = vunpack.c.h.b16 %v329
        %v465 = vunpack.c.l.b16 %v330
        %v466 = vunpack.c.l.b16 %v331
        %v467 = vunpack.c.h.b16 %v331
        %v468 = vunpack.c.l.b16 %v332
        %v469 = vunpack.c.l.b16 %v333
        %v470 = vunpack.c.h.b16 %v333
        %v471 = vunpack.c.l.b16 %v334
        %v472 = vunpack.c.l.b16 %v335
        %v473 = vunpack.c.h.b16 %v335
        %v474 = vunpack.c.l.b16 %v336
        %v475 = vunpack.c.l.b16 %v337
        %v476 = vunpack.c.h.b16 %v337
        %v477 = vunpack.c.l.b16 %v338
        %v478 = vunpack.c.l.b16 %v339
        %v479 = vunpack.c.h.b16 %v339
        %v480 = vunpack.c.l.b16 %v340
        %v481 = vunpack.c.l.b16 %v341
        %v482 = vunpack.c.h.b16 %v341
        %v483 = vunpack.c.l.b16 %v342
        %v484 = vunpack.c.l.b16 %v343
        %v485 = vunpack.c.h.b16 %v343
        %v486 = vunpack.c.l.b16 %v344
        %v487 = vunpack.c.l.b16 %v345
        %v488 = vunpack.c.h.b16 %v345
        %v489 = vunpack.c.l.b16 %v346
        %v490 = vunpack.c.l.b16 %v347
        %v491 = vunpack.c.h.b16 %v347
        %v492 = vunpack.c.l.b16 %v348
        %v493 = vpack.c.b16 %v448, %v445
        %v494 = vpack.c.b16 %v449, %v446
        %v495 = vpack.c.b16 %v450, %v447
        %v496 = vpack.c.b16 %v454, %v451
        %v497 = vpack.c.b16 %v455, %v452
        %v498 = vpack.c.b16 %v456, %v453
        %v499 = vpack.c.b16 %v460, %v457
        %v500 = vpack.c.b16 %v461, %v458
        %v501 = vpack.c.b16 %v462, %v459
        %v502 = vpack.c.b16 %v466, %v463
        %v503 = vpack.c.b16 %v467, %v464
        %v504 = vpack.c.b16 %v468, %v465
        %v505 = vpack.c.b16 %v472, %v469
        %v506 = vpack.c.b16 %v473, %v470
        %v507 = vpack.c.b16 %v474, %v471
        %v508 = vpack.c.b16 %v478, %v475
        %v509 = vpack.c.b16 %v479, %v476
        %v510 = vpack.c.b16 %v480, %v477
        %v511 = vpack.c.b16 %v484, %v481
        %v512 = vpack.c.b16 %v485, %v482
        %v513 = vpack.c.b16 %v486, %v483
        %v514 = vpack.c.b16 %v490, %v487
        %v515 = vpack.c.b16 %v491, %v488
        %v516 = vpack.c.b16 %v492, %v489
        %v589 = vunpack.c.l.b16 %v349
        %v590 = vunpack.c.l.b16 %v350
        %v591 = vunpack.c.l.b16 %v351
        %v592 = vunpack.c.l.b16 %v352
        %v593 = vunpack.c.l.b16 %v353
        %v594 = vunpack.c.l.b16 %v354
        %v595 = vunpack.c.l.b16 %v355
        %v596 = vunpack.c.l.b16 %v356
        %v597 = vunpack.c.l.b16 %v357
        %v598 = vunpack.c.l.b16 %v358
        %v599 = vunpack.c.l.b16 %v359
        %v600 = vunpack.c.l.b16 %v360
        %v601 = vunpack.c.l.b16 %v361
        %v602 = vunpack.c.l.b16 %v362
        %v603 = vunpack.c.l.b16 %v363
        %v604 = vunpack.c.l.b16 %v364
        %v605 = vunpack.c.l.b16 %v365
        %v606 = vunpack.c.l.b16 %v366
        %v607 = vunpack.c.l.b16 %v367
        %v608 = vunpack.c.l.b16 %v368
        %v609 = vunpack.c.l.b16 %v369
        %v610 = vunpack.c.l.b16 %v370
        %v611 = vunpack.c.l.b16 %v371
        %v612 = vunpack.c.l.b16 %v372
        %v613 = vunpack.c.l.b16 %v373
        %v614 = vunpack.c.l.b16 %v374
        %v615 = vunpack.c.l.b16 %v375
        %v616 = vunpack.c.l.b16 %v376
        %v617 = vunpack.c.l.b16 %v377
        %v618 = vunpack.c.l.b16 %v378
        %v619 = vunpack.c.l.b16 %v379
        %v620 = vunpack.c.l.b16 %v380
        %v621 = vunpack.c.l.b16 %v381
        %v622 = vunpack.c.l.b16 %v382
        %v623 = vunpack.c.l.b16 %v383
        %v624 = vunpack.c.l.b16 %v384
        %v625 = vunpack.c.l.b16 %v385
        %v626 = vunpack.c.l.b16 %v386
        %v627 = vunpack.c.l.b16 %v387
        %v628 = vunpack.c.l.b16 %v388
        %v629 = vunpack.c.l.b16 %v389
        %v630 = vunpack.c.l.b16 %v390
        %v631 = vunpack.c.l.b16 %v391
        %v632 = vunpack.c.l.b16 %v392
        %v633 = vunpack.c.l.b16 %v393
        %v634 = vunpack.c.l.b16 %v394
        %v635 = vunpack.c.l.b16 %v395
        %v636 = vunpack.c.l.b16 %v396
        %v637 = vpack.c.b16 %v590, %v589
        %v638 = vpack.c.b16 %v592, %v591
        %v639 = vpack.c.b16 %v594, %v593
        %v640 = vpack.c.b16 %v596, %v595
        %v641 = vpack.c.b16 %v598, %v597
        %v642 = vpack.c.b16 %v600, %v599
        %v643 = vpack.c.b16 %v602, %v601
        %v644 = vpack.c.b16 %v604, %v603
        %v645 = vpack.c.b16 %v606, %v605
        %v646 = vpack.c.b16 %v608, %v607
        %v647 = vpack.c.b16 %v610, %v609
        %v648 = vpack.c.b16 %v612, %v611
        %v649 = vpack.c.b16 %v614, %v613
        %v650 = vpack.c.b16 %v616, %v615
        %v651 = vpack.c.b16 %v618, %v617
        %v652 = vpack.c.b16 %v620, %v619
        %v653 = vpack.c.b16 %v622, %v621
        %v654 = vpack.c.b16 %v624, %v623
        %v655 = vpack.c.b16 %v626, %v625
        %v656 = vpack.c.b16 %v628, %v627
        %v657 = vpack.c.b16 %v630, %v629
        %v658 = vpack.c.b16 %v632, %v631
        %v659 = vpack.c.b16 %v634, %v633
        %v660 = vpack.c.b16 %v636, %v635
        %685 = vmatprep.subr.bf16.mxu0 0
        %686 = vmatpush1.bf16.msra.mxu0 %v637
        %687 = vmatprep.subr.bf16.mxu0 0
        %688 = vmatpush1.bf16.msra.mxu0 %v638
        %689 = vmatprep.subr.bf16.mxu0 0
        %690 = vmatpush1.bf16.msra.mxu0 %v639
        %691 = vmatprep.subr.bf16.mxu0 0
        %692 = vmatpush1.bf16.msra.mxu0 %v640
        %693 = vmatprep.subr.bf16.mxu0 0
        %694 = vmatpush1.bf16.msra.mxu0 %v641
        %695 = vmatprep.subr.bf16.mxu0 0
        %696 = vmatpush1.bf16.msra.mxu0 %v642
        %697 = vmatprep.subr.bf16.mxu0 0
        %698 = vmatpush1.bf16.msra.mxu0 %v643
        %699 = vmatprep.subr.bf16.mxu0 0
        %700 = vmatpush1.bf16.msra.mxu0 %v644
        %701 = vmatprep.subr.bf16.mxu0 0
        %702 = vmatpush1.bf16.msra.mxu0 %v645
        %703 = vmatprep.subr.bf16.mxu0 0
        %704 = vmatpush1.bf16.msra.mxu0 %v646
        %705 = vmatprep.subr.bf16.mxu0 0
        %706 = vmatpush1.bf16.msra.mxu0 %v647
        %707 = vmatprep.subr.bf16.mxu0 0
        %708 = vmatpush1.bf16.msra.mxu0 %v648
        %709 = vmatprep.subr.bf16.mxu0 0
        %710 = vmatpush1.bf16.msra.mxu0 %v649
        %711 = vmatprep.subr.bf16.mxu0 0
        %712 = vmatpush1.bf16.msra.mxu0 %v650
        %713 = vmatprep.subr.bf16.mxu0 0
        %714 = vmatpush1.bf16.msra.mxu0 %v651
        %715 = vmatprep.subr.bf16.mxu0 0
        %716 = vmatpush1.bf16.msra.mxu0 %v652
        %717 = vmatprep.mubr.bf16.mxu0 %v494
        %718 = vmatmul.mubr.bf16.gmra.mrb[0].mxu0 %v493
        %v719 = vpop.f32.mrb[0].mxu0
        %v720 = vadd.f32 %v397, %v719
        %v721 = vpop.f32.mrb[0].mxu0
        %v722 = vpop.f32.mrb[0].mxu0
        %v723 = vadd.f32 %v398, %v722
        %v724 = vpop.f32.mrb[0].mxu0
        %725 = vmatprep.mubr.bf16.mxu0 %v497
        %726 = vmatmul.mubr.bf16.gmra.mrb[0].mxu0 %v496
        %v727 = vpop.f32.mrb[0].mxu0
        %v728 = vadd.f32 %v399, %v727
        %v729 = vpop.f32.mrb[0].mxu0
        %v730 = vpop.f32.mrb[0].mxu0
        %v731 = vadd.f32 %v400, %v730
        %v732 = vpop.f32.mrb[0].mxu0
        %733 = vmatprep.mubr.bf16.mxu0 %v500
        %734 = vmatmul.mubr.bf16.gmra.mrb[0].mxu0 %v499
        %v735 = vpop.f32.mrb[0].mxu0
        %v736 = vadd.f32 %v401, %v735
        %v737 = vpop.f32.mrb[0].mxu0
        %v738 = vpop.f32.mrb[0].mxu0
        %v739 = vadd.f32 %v402, %v738
        %v740 = vpop.f32.mrb[0].mxu0
        %741 = vmatprep.mubr.bf16.mxu0 %v503
        %742 = vmatmul.mubr.bf16.gmra.mrb[0].mxu0 %v502
        %v743 = vpop.f32.mrb[0].mxu0
        %v744 = vadd.f32 %v403, %v743
        %v745 = vpop.f32.mrb[0].mxu0
        %v746 = vpop.f32.mrb[0].mxu0
        %v747 = vadd.f32 %v404, %v746
        %v748 = vpop.f32.mrb[0].mxu0
        %749 = vmatprep.mubr.bf16.mxu0 %v506
        %750 = vmatmul.mubr.bf16.gmra.mrb[0].mxu0 %v505
        %v751 = vpop.f32.mrb[0].mxu0
        %v752 = vadd.f32 %v405, %v751
        %v753 = vpop.f32.mrb[0].mxu0
        %v754 = vpop.f32.mrb[0].mxu0
        %v755 = vadd.f32 %v406, %v754
        %v756 = vpop.f32.mrb[0].mxu0
        %757 = vmatprep.mubr.bf16.mxu0 %v509
        %758 = vmatmul.mubr.bf16.gmra.mrb[0].mxu0 %v508
        %v759 = vpop.f32.mrb[0].mxu0
        %v760 = vadd.f32 %v407, %v759
        %v761 = vpop.f32.mrb[0].mxu0
        %v762 = vpop.f32.mrb[0].mxu0
        %v763 = vadd.f32 %v408, %v762
        %v764 = vpop.f32.mrb[0].mxu0
        %765 = vmatprep.mubr.bf16.mxu0 %v512
        %766 = vmatmul.mubr.bf16.gmra.mrb[0].mxu0 %v511
        %v767 = vpop.f32.mrb[0].mxu0
        %v768 = vadd.f32 %v409, %v767
        %v769 = vpop.f32.mrb[0].mxu0
        %v770 = vpop.f32.mrb[0].mxu0
        %v771 = vadd.f32 %v410, %v770
        %v772 = vpop.f32.mrb[0].mxu0
        %773 = vmatprep.mubr.bf16.mxu0 %v515
        %774 = vmatmul.mubr.bf16.gmra.mrb[0].mxu0 %v514
        %v775 = vpop.f32.mrb[0].mxu0
        %v776 = vadd.f32 %v411, %v775
        %v777 = vpop.f32.mrb[0].mxu0
        %v778 = vpop.f32.mrb[0].mxu0
        %v779 = vadd.f32 %v412, %v778
        %v780 = vpop.f32.mrb[0].mxu0
        %781 = vdwg.mxu0
        %782 = vmatprep.subr.bf16.mxu0 0
        %783 = vmatpush1.bf16.msra.mxu0 %v653
        %784 = vmatprep.subr.bf16.mxu0 0
        %785 = vmatpush1.bf16.msra.mxu0 %v654
        %786 = vmatprep.subr.bf16.mxu0 0
        %787 = vmatpush1.bf16.msra.mxu0 %v655
        %788 = vmatprep.subr.bf16.mxu0 0
        %789 = vmatpush1.bf16.msra.mxu0 %v656
        %790 = vmatprep.subr.bf16.mxu0 0
        %791 = vmatpush1.bf16.msra.mxu0 %v657
        %792 = vmatprep.subr.bf16.mxu0 0
        %793 = vmatpush1.bf16.msra.mxu0 %v658
        %794 = vmatprep.subr.bf16.mxu0 0
        %795 = vmatpush1.bf16.msra.mxu0 %v659
        %796 = vmatprep.subr.bf16.mxu0 0
        %797 = vmatpush1.bf16.msra.mxu0 %v660
        %798 = vmatprep.subr.bf16.mxu0 0
        %799 = vmatpush1.bf16.msra.mxu0 0
        %800 = vmatprep.subr.bf16.mxu0 0
        %801 = vmatpush1.bf16.msra.mxu0 0
        %802 = vmatprep.subr.bf16.mxu0 0
        %803 = vmatpush1.bf16.msra.mxu0 0
        %804 = vmatprep.subr.bf16.mxu0 0
        %805 = vmatpush1.bf16.msra.mxu0 0
        %806 = vmatprep.subr.bf16.mxu0 0
        %807 = vmatpush1.bf16.msra.mxu0 0
        %808 = vmatprep.subr.bf16.mxu0 0
        %809 = vmatpush1.bf16.msra.mxu0 0
        %810 = vmatprep.subr.bf16.mxu0 0
        %811 = vmatpush1.bf16.msra.mxu0 0
        %812 = vmatprep.subr.bf16.mxu0 0
        %813 = vmatpush1.bf16.msra.mxu0 0
        %814 = vmatprep.mubr.bf16.mxu0 0
        %815 = vmatmul.mubr.bf16.gmra.mrb[0].mxu0 %v495
        %v816 = vpop.f32.mrb[0].mxu0
        %v817 = vadd.f32 %v720, %v816
        %v818 = vpop.f32.mrb[0].mxu0
        %v819 = vpop.f32.mrb[0].mxu0
        %v820 = vadd.f32 %v723, %v819
        %v821 = vpop.f32.mrb[0].mxu0
        %822 = vmatprep.mubr.bf16.mxu0 0
        %823 = vmatmul.mubr.bf16.gmra.mrb[0].mxu0 %v498
        %v824 = vpop.f32.mrb[0].mxu0
        %v825 = vadd.f32 %v728, %v824
        %v826 = vpop.f32.mrb[0].mxu0
        %v827 = vpop.f32.mrb[0].mxu0
        %v828 = vadd.f32 %v731, %v827
        %v829 = vpop.f32.mrb[0].mxu0
        %830 = vmatprep.mubr.bf16.mxu0 0
        %831 = vmatmul.mubr.bf16.gmra.mrb[0].mxu0 %v501
        %v832 = vpop.f32.mrb[0].mxu0
        %v833 = vadd.f32 %v736, %v832
        %v834 = vpop.f32.mrb[0].mxu0
        %v835 = vpop.f32.mrb[0].mxu0
        %v836 = vadd.f32 %v739, %v835
        %v837 = vpop.f32.mrb[0].mxu0
        %838 = vmatprep.mubr.bf16.mxu0 0
        %839 = vmatmul.mubr.bf16.gmra.mrb[0].mxu0 %v504
        %v840 = vpop.f32.mrb[0].mxu0
        %v841 = vadd.f32 %v744, %v840
        %v842 = vpop.f32.mrb[0].mxu0
        %v843 = vpop.f32.mrb[0].mxu0
        %v844 = vadd.f32 %v747, %v843
        %v845 = vpop.f32.mrb[0].mxu0
        %846 = vmatprep.mubr.bf16.mxu0 0
        %847 = vmatmul.mubr.bf16.gmra.mrb[0].mxu0 %v507
        %v848 = vpop.f32.mrb[0].mxu0
        %v849 = vadd.f32 %v752, %v848
        %v850 = vpop.f32.mrb[0].mxu0
        %v851 = vpop.f32.mrb[0].mxu0
        %v852 = vadd.f32 %v755, %v851
        %v853 = vpop.f32.mrb[0].mxu0
        %854 = vmatprep.mubr.bf16.mxu0 0
        %855 = vmatmul.mubr.bf16.gmra.mrb[0].mxu0 %v510
        %v856 = vpop.f32.mrb[0].mxu0
        %v857 = vadd.f32 %v760, %v856
        %v858 = vpop.f32.mrb[0].mxu0
        %v859 = vpop.f32.mrb[0].mxu0
        %v860 = vadd.f32 %v763, %v859
        %v861 = vpop.f32.mrb[0].mxu0
        %862 = vmatprep.mubr.bf16.mxu0 0
        %863 = vmatmul.mubr.bf16.gmra.mrb[0].mxu0 %v513
        %v864 = vpop.f32.mrb[0].mxu0
        %v865 = vadd.f32 %v768, %v864
        %v866 = vpop.f32.mrb[0].mxu0
        %v867 = vpop.f32.mrb[0].mxu0
        %v868 = vadd.f32 %v771, %v867
        %v869 = vpop.f32.mrb[0].mxu0
        %870 = vmatprep.mubr.bf16.mxu0 0
        %871 = vmatmul.mubr.bf16.gmra.mrb[0].mxu0 %v516
        %v872 = vpop.f32.mrb[0].mxu0
        %v873 = vadd.f32 %v776, %v872
        %v874 = vpop.f32.mrb[0].mxu0
        %v875 = vpop.f32.mrb[0].mxu0
        %v876 = vadd.f32 %v779, %v875
        %v877 = vpop.f32.mrb[0].mxu0
        %878 = vdwg.mxu0
        %v879 = vxor.u32 %v817, 2147483648
        %v880 = vxor.u32 %v820, 2147483648
        %v881 = vxor.u32 %v825, 2147483648
        %v882 = vxor.u32 %v828, 2147483648
        %v883 = vmul.f32 %v879, 1.442695
        %v884 = vpow.pop %v883
        %v885 = vmul.f32 %v880, 1.442695
        %v886 = vpow.pop %v885
        %v887 = vmul.f32 %v881, 1.442695
        %v888 = vpow.pop %v887
        %v889 = vmul.f32 %v882, 1.442695
        %v890 = vpow.pop %v889
        %v891 = vadd.f32 %v884, 1.0
        %v892 = vadd.f32 %v886, 1.0
        %v893 = vadd.f32 %v888, 1.0
        %v894 = vadd.f32 %v890, 1.0
        %v895 = vrcp.pop %v891
        %v896 = vmul.f32 1.0, %v895
        %v897 = vrcp.pop %v892
        %v898 = vmul.f32 1.0, %v897
        %v899 = vrcp.pop %v893
        %v900 = vmul.f32 1.0, %v899
        %v901 = vrcp.pop %v894
        %v902 = vmul.f32 1.0, %v901
        %v903 = vxor.u32 %v833, 2147483648
        %v904 = vxor.u32 %v836, 2147483648
        %v905 = vxor.u32 %v841, 2147483648
        %v906 = vxor.u32 %v844, 2147483648
        %v907 = vmul.f32 %v903, 1.442695
        %v908 = vpow.pop %v907
        %v909 = vmul.f32 %v904, 1.442695
        %v910 = vpow.pop %v909
        %v911 = vmul.f32 %v905, 1.442695
        %v912 = vpow.pop %v911
        %v913 = vmul.f32 %v906, 1.442695
        %v914 = vpow.pop %v913
        %v915 = vadd.f32 %v908, 1.0
        %v916 = vadd.f32 %v910, 1.0
        %v917 = vadd.f32 %v912, 1.0
        %v918 = vadd.f32 %v914, 1.0
        %v919 = vrcp.pop %v915
        %v920 = vmul.f32 1.0, %v919
        %v921 = vrcp.pop %v916
        %v922 = vmul.f32 1.0, %v921
        %v923 = vrcp.pop %v917
        %v924 = vmul.f32 1.0, %v923
        %v925 = vrcp.pop %v918
        %v926 = vmul.f32 1.0, %v925
        %v927 = vxor.u32 %v849, 2147483648
        %v928 = vxor.u32 %v852, 2147483648
        %v929 = vxor.u32 %v857, 2147483648
        %v930 = vxor.u32 %v860, 2147483648
        %v931 = vmul.f32 %v927, 1.442695
        %v932 = vpow.pop %v931
        %v933 = vmul.f32 %v928, 1.442695
        %v934 = vpow.pop %v933
        %v935 = vmul.f32 %v929, 1.442695
        %v936 = vpow.pop %v935
        %v937 = vmul.f32 %v930, 1.442695
        %v938 = vpow.pop %v937
        %v939 = vadd.f32 %v932, 1.0
        %v940 = vadd.f32 %v934, 1.0
        %v941 = vadd.f32 %v936, 1.0
        %v942 = vadd.f32 %v938, 1.0
        %v943 = vrcp.pop %v939
        %v944 = vmul.f32 1.0, %v943
        %v945 = vrcp.pop %v940
        %v946 = vmul.f32 1.0, %v945
        %v947 = vrcp.pop %v941
        %v948 = vmul.f32 1.0, %v947
        %v949 = vrcp.pop %v942
        %v950 = vmul.f32 1.0, %v949
        %v951 = vtanh.pop %v865
        %v952 = vtanh.pop %v868
        %v953 = vtanh.pop %v873
        %v954 = vtanh.pop %v876
        %v955 = vld [vmem:[%s279] sm:$0xff]
        %v956 = vld [vmem:[%s279 + $0x8] sm:$0xff]
        %v957 = vld [vmem:[%s279 + $0x10] sm:$0xff]
        %v958 = vld [vmem:[%s279 + $0x18] sm:$0xff]
        %v959 = vmul.f32 %v920, %v955
        %v960 = vmul.f32 %v922, %v956
        %v961 = vmul.f32 %v924, %v957
        %v962 = vmul.f32 %v926, %v958
        %v963 = vmul.f32 %v896, %v951
        %v964 = vmul.f32 %v898, %v952
        %v965 = vmul.f32 %v900, %v953
        %v966 = vmul.f32 %v902, %v954
        %v967 = vadd.f32 %v959, %v963
        %v968 = vadd.f32 %v960, %v964
        %v969 = vadd.f32 %v961, %v965
        %v970 = vadd.f32 %v962, %v966
        %v971 = vtanh.pop %v967
        %v972 = vtanh.pop %v968
        %v973 = vtanh.pop %v969
        %v974 = vtanh.pop %v970
        %v975 = vmul.f32 %v944, %v971
        %v976 = vmul.f32 %v946, %v972
        %v977 = vmul.f32 %v948, %v973
        %v978 = vmul.f32 %v950, %v974
        %979 = vst [vmem:[%s308] sm:$0xff] %v975
        %980 = vst [vmem:[%s308 + $0x8] sm:$0xff] %v976
        %981 = vst [vmem:[%s308 + $0x10] sm:$0xff] %v977
        %982 = vst [vmem:[%s308 + $0x18] sm:$0xff] %v978
        %983 = vst [vmem:[%s315] sm:$0xff] %v967
        %984 = vst [vmem:[%s315 + $0x8] sm:$0xff] %v968
        %985 = vst [vmem:[%s315 + $0x10] sm:$0xff] %v969
        %986 = vst [vmem:[%s315 + $0x18] sm:$0xff] %v970
        %s987 = sand.u32 %s127, 1
        %s988 = scalar_lea.sflag [#allocation4], %s987
        %s989 = sand.u32 %s127, 1
        %s990 = smul.addr %s989, 32
        %s991 = scalar_lea.vmem [#allocation9], %s990
        %s992 = sand.u32 %s153, 1
        %s993 = scalar_lea.sflag [#allocation11], %s992
        %s994 = sand.u32 %s153, 1
        %s995 = smul.addr %s994, 32
        %s996 = scalar_lea.vmem [#allocation10], %s995
        // Predicated region
        $region53: #{tpu_custom_call.1} parent=35 // pred_check
          %p997 = pneg %p137
        $region54: #{tpu_custom_call.1} parent=35 // pred_check_branch
          %999 = sbr.rel (%p997) target = $region56
        $region55: #{tpu_custom_call.1} parent=35 // pred_region
          %s1001 = ssub.s32 512, 512
          %1002 = vsyncadd %s988, %s1001
          %s1003 = smul.addr %s25, 128
          %s1004 = scalar_lea.hbm %s4, %s1003
          %s1005 = sshll.u32 %s991, 4
          %s1006 = int_to_ptr.vmem [resolvable:$true] %s1005
          %1011 = dma.vmem_to_hbm [thread:$0]  %s1006, 512, %s1004, %s988, 128, 512, 8
        $region56: #{tpu_custom_call.1} parent=35 // pred_fallthru
          _
        // Predicated region
        $region57: #{tpu_custom_call.1} parent=35 // pred_check
          %p1012 = pneg %p163
        $region58: #{tpu_custom_call.1} parent=35 // pred_check_branch
          %1014 = sbr.rel (%p1012) target = $region60
        $region59: #{tpu_custom_call.1} parent=35 // pred_region
          %s1016 = ssub.s32 512, 512
          %1017 = vsyncadd %s993, %s1016
          %s1018 = smul.addr %s25, 128
          %s1019 = scalar_lea.hbm %s5, %s1018
          %s1020 = sshll.u32 %s996, 4
          %s1021 = int_to_ptr.vmem [resolvable:$true] %s1020
          %1026 = dma.vmem_to_hbm [thread:$0]  %s1021, 512, %s1019, %s993, 128, 512, 8
        $region60: #{tpu_custom_call.1} parent=35 // pred_fallthru
          _
      $region36: #{tpu_custom_call.1} parent=5 // pred_fallthru
        _
      %p1027 = scmp.le.s32.totalorder 2, %s20
      // Predicated region
      $region61: #{tpu_custom_call.1} parent=5 // pred_check
        %p1028 = pneg %p1027
      $region62: #{tpu_custom_call.1} parent=5 // pred_check_branch
        %1030 = sbr.rel (%p1028) target = $region64
      $region63: #{tpu_custom_call.1} parent=5 // pred_region
        %s1031 = ssub.s32 %s20, 2
        // Predicated region
        $region65: #{tpu_custom_call.1} parent=63 // pred_check
          %p1032 = pneg %p143
        $region66: #{tpu_custom_call.1} parent=63 // pred_check_branch
          %1034 = sbr.rel (%p1032) target = $region68
        $region67: #{tpu_custom_call.1} parent=63 // pred_region
          %s1035 = sand.u32 %s128, 1
          %s1036 = scalar_lea.sflag [#allocation4], %s1035
          %s1037 = sand.u32 %s128, 1
          %s1038 = smul.addr %s1037, 32
          %s1039 = scalar_lea.vmem [#allocation9], %s1038
          %1040 = dma.done %s1036, 512
        $region68: #{tpu_custom_call.1} parent=63 // pred_fallthru
          _
        // Predicated region
        $region69: #{tpu_custom_call.1} parent=63 // pred_check
          %p1041 = pneg %p169
        $region70: #{tpu_custom_call.1} parent=63 // pred_check_branch
          %1043 = sbr.rel (%p1041) target = $region72
        $region71: #{tpu_custom_call.1} parent=63 // pred_region
          %s1044 = sand.u32 %s154, 1
          %s1045 = scalar_lea.sflag [#allocation11], %s1044
          %s1046 = sand.u32 %s154, 1
          %s1047 = smul.addr %s1046, 32
          %s1048 = scalar_lea.vmem [#allocation10], %s1047
          %1049 = dma.done %s1045, 512
        $region72: #{tpu_custom_call.1} parent=63 // pred_fallthru
          _
      $region64: #{tpu_custom_call.1} parent=5 // pred_fallthru
        _
    $region6: #{tpu_custom_call.1} parent=1 // loop_footer
      %s24 = sadd.s32 1, %s20
    $region7: #{tpu_custom_call.1} parent=1 // loop_footer_branch
      %19 = sbr.rel target = $region3
    $region8: #{tpu_custom_call.1} parent=1 // loop_exit
      _
    %1050 = vsyncpa [#allocation3], 1
    %s1051 = scalar_lea.sflag [#allocation3], 1
    %1052 = vsyncpa %s1051, 1
    %1053 = vsyncpa [#allocation6], 1
    %1054 = vsyncpa [#allocation4], 1
    %s1055 = scalar_lea.sflag [#allocation4], 1
    %1056 = vsyncpa %s1055, 1
    %1057 = vsyncpa [#allocation11], 1
    %s1058 = scalar_lea.sflag [#allocation11], 1
    %1059 = vsyncpa %s1058, 1

</llo_original>
